<compile_context>
chip_gen: v7x
topology: tpu7x:2x2x1
jax: 0.10.0
libtpu: 0.0.40
codegen_flags: <defaults>
</compile_context>

<pallas_src>
import functools
import math

import jax
import jax.numpy as jnp
from jax.experimental import pallas as pl
from jax.experimental.pallas import tpu as pltpu


# ---------------------------------------------------------------------------
# Kernel
# ---------------------------------------------------------------------------
def _lstm_cell_kernel(xh_ref, c_ref, w_ref, h_out_ref, c_out_ref, *, block_h):
    """One hidden tile: single fused 4-gate matmul + LSTM epilogue."""
    xh = xh_ref[...]                               # (B, in+out)
    c_prev = c_ref[...].astype(jnp.float32)        # (B, block_h)

    # Single MXU contraction for all four gates of this hidden tile.
    # Weight columns are laid out [ i | f | g | o ], each block_h wide.
    z = jnp.dot(xh, w_ref[...], preferred_element_type=jnp.float32)  # (B, 4*bh)

    i = jax.nn.sigmoid(z[:, 0 * block_h:1 * block_h])
    f = jax.nn.sigmoid(z[:, 1 * block_h:2 * block_h])
    g = jnp.tanh(z[:, 2 * block_h:3 * block_h])
    o = jax.nn.sigmoid(z[:, 3 * block_h:4 * block_h])

    c_new = f * c_prev + i * g
    h_new = o * jnp.tanh(c_prev)        # matches reference: tanh(c_prev)

    h_out_ref[...] = h_new.astype(h_out_ref.dtype)
    c_out_ref[...] = c_new.astype(c_out_ref.dtype)


# ---------------------------------------------------------------------------
# One-time parameter preparation (hoisted out of the per-call path)
# ---------------------------------------------------------------------------
def _pick_block_h(in_features, out_features, dtype_bytes=4,
                  weight_vmem_budget=8 * 1024 * 1024):
    """Pick the hidden-dim tile.

    Keep everything resident if the (double-buffered) fused weight fits a
    conservative budget that is safely below the default scoped VMEM limits on
    v5e (16 MiB) / v6e (32 MiB) / v7x (32 MiB, 64 MiB physical).  Otherwise
    tile the hidden dim in multiples of 128 (lane-aligned slices & stores).
    """
    k = in_features + out_features
    whole_bytes = 2 * k * 4 * out_features * dtype_bytes
    if whole_bytes <= weight_vmem_budget or out_features % 128 != 0:
        return out_features
    best = 128
    for ho in range(128, out_features + 1, 128):
        if out_features % ho:
            continue
        if 2 * k * 4 * ho * dtype_bytes <= weight_vmem_budget:
            best = ho
    return best


def prepare_lstm_params(params, block_h=None):
    """One-time weight prep (NOT per call).

    Transposes, fuses W/U along K, stacks the four gates and reorders columns
    so each hidden tile's four gate blocks are contiguous in memory.
    """
    out_features, in_features = params["Wi"].shape
    k = in_features + out_features
    if block_h is None:
        block_h = _pick_block_h(in_features, out_features)
    assert out_features % block_h == 0
    assert block_h == out_features or block_h % 128 == 0, (
        "hidden tile must be the full hidden size or a multiple of 128")
    n_tiles = out_features // block_h

    def gate_wt(gate):  # (in+out, out) = [W_gate ; U_gate]^T
        return jnp.concatenate([params["W" + gate].T, params["U" + gate].T],
                               axis=0)

    w = jnp.stack([gate_wt("i"), gate_wt("f"), gate_wt("g"), gate_wt("o")],
                  axis=1)                              # (K, 4, out)
    # (K, 4, out) -> (K, 4, n_tiles, bh) -> (K, n_tiles, 4, bh) -> (K, 4*out)
    w = (w.reshape(k, 4, n_tiles, block_h)
          .transpose(0, 2, 1, 3)
          .reshape(k, 4 * out_features))
    # TODO(synk): for large hidden sizes, store `w` as bfloat16 and keep the
    # f32-accumulate matmul + f32 epilogue (native MXU rate, half the VMEM).
    return dict(w_stacked=w, block_h=block_h,
                in_features=in_features, out_features=out_features)


# ---------------------------------------------------------------------------
# Wrapper
# ---------------------------------------------------------------------------
def lstm_cell_pallas(x, state, prepared):
    """One LSTM-cell step.  `prepared` comes from prepare_lstm_params."""
    in_features = prepared["in_features"]
    out_features = prepared["out_features"]
    block_h = prepared["block_h"]
    b = x.shape[0]
    assert x.shape[1] == in_features, "Wrong x size"

    if state is None:
        h_prev = jnp.zeros((b, out_features), dtype=x.dtype)
        c_prev = jnp.zeros((b, out_features), dtype=x.dtype)
    else:
        h_prev, c_prev = state
        assert h_prev.shape[1] == out_features, "Wrong h size"

    xh = jnp.concatenate([x, h_prev], axis=1)   # (B, in+out) cheap per-call glue
    k = in_features + out_features
    n_tiles = out_features // block_h

    h, c = pl.pallas_call(
        functools.partial(_lstm_cell_kernel, block_h=block_h),
        out_shape=(jax.ShapeDtypeStruct((b, out_features), x.dtype),
                   jax.ShapeDtypeStruct((b, out_features), x.dtype)),
        grid=(n_tiles,),
        in_specs=[
            pl.BlockSpec((b, k), lambda j: (0, 0)),            # xh: VMEM-resident
            pl.BlockSpec((b, block_h), lambda j: (0, j)),      # c_prev tile
            pl.BlockSpec((k, 4 * block_h), lambda j: (0, j)),  # fused gate weights
        ],
        out_specs=(
            pl.BlockSpec((b, block_h), lambda j: (0, j)),      # h tile
            pl.BlockSpec((b, block_h), lambda j: (0, j)),      # c tile
        ),
        compiler_params=pltpu.CompilerParams(
            dimension_semantics=("parallel",)),                # v7x: 2 TCs
    )(xh, c_prev, prepared["w_stacked"])
    return h, c


# ---------------------------------------------------------------------------
# Init + pure-JAX reference (mirrors the PyTorch module exactly)
# ---------------------------------------------------------------------------
def init_lstm_params(key, in_features, out_features, dtype=jnp.float32):
    bound = math.sqrt(1.0 / out_features)
    names = ["Wi", "Ui", "Wf", "Uf", "Wg", "Ug", "Wo", "Uo"]
    shapes = {
        "Wi": (out_features, in_features), "Ui": (out_features, out_features),
        "Wf": (out_features, in_features), "Uf": (out_features, out_features),
        "Wg": (out_features, in_features), "Ug": (out_features, out_features),
        "Wo": (out_features, in_features), "Uo": (out_features, out_features),
    }
    keys = jax.random.split(key, len(names))
    return {n: jax.random.uniform(kk, shapes[n], dtype=dtype,
                                  minval=-bound, maxval=bound)
            for n, kk in zip(names, keys)}


def lstm_cell_ref(x, h_prev, c_prev, p):
    sig = jax.nn.sigmoid
    i = sig(x @ p["Wi"].T + h_prev @ p["Ui"].T)
    f = sig(x @ p["Wf"].T + h_prev @ p["Uf"].T)
    g = jnp.tanh(x @ p["Wg"].T + h_prev @ p["Ug"].T)
    o = sig(x @ p["Wo"].T + h_prev @ p["Uo"].T)
    c = f * c_prev + i * g
    h = o * jnp.tanh(c_prev)          # reference module uses c_prev here
    return h, c


def _check(a, b):
    assert jnp.allclose(a, b, atol=2e-5, rtol=2e-5), float(jnp.abs(a - b).max())


# ---------------------------------------------------------------------------
if __name__ == "__main__":
    key = jax.random.PRNGKey(0)
    (k_param, k_x, k_h, k_c,
     k_param2, k_x2, k_h2, k_c2) = jax.random.split(key, 8)

    # --- small shapes consistent with the module (B=2, in=16, hidden=32) ---
    batch, in_features, out_features = 2, 16, 32
    params = init_lstm_params(k_param, in_features, out_features)
    prepared = prepare_lstm_params(params)          # one-time weight prep

    x = jax.random.normal(k_x, (batch, in_features), dtype=jnp.float32)

    # state=None path (zero initial h, c).
    h, c = lstm_cell_pallas(x, None, prepared)
    jax.block_until_ready((h, c))
    zeros = jnp.zeros((batch, out_features), dtype=jnp.float32)
    h_ref, c_ref = lstm_cell_ref(x, zeros, zeros, params)
    _check(h, h_ref)
    _check(c, c_ref)

    # Explicit-state path with nonzero h/c.
    h_prev = jax.random.normal(k_h, (batch, out_features), dtype=jnp.float32)
    c_prev = jax.random.normal(k_c, (batch, out_features), dtype=jnp.float32)
    h2, c2 = lstm_cell_pallas(x, (h_prev, c_prev), prepared)
    jax.block_until_ready((h2, c2))
    h2_ref, c2_ref = lstm_cell_ref(x, h_prev, c_prev, params)
    _check(h2, h2_ref)
    _check(c2, c2_ref)

    # --- exercise the hidden-tiled path (grid=(2,), lane-aligned 128 tiles) ---
    b3, in3, out3 = 8, 64, 256
    params3 = init_lstm_params(k_param2, in3, out3)
    prepared3 = prepare_lstm_params(params3, block_h=128)
    x3 = jax.random.normal(k_x2, (b3, in3), dtype=jnp.float32)
    h3p = jax.random.normal(k_h2, (b3, out3), dtype=jnp.float32)
    c3p = jax.random.normal(k_c2, (b3, out3), dtype=jnp.float32)
    h3, c3 = lstm_cell_pallas(x3, (h3p, c3p), prepared3)
    jax.block_until_ready((h3, c3))
    h3_ref, c3_ref = lstm_cell_ref(x3, h3p, c3p, params3)
    _check(h3, h3_ref)
    _check(c3, c3_ref)

    print("KERNEL_OK")
</pallas_src>

<mosaic_0001>
module attributes {stable_mosaic.version = 11 : i64} {
  func.func @_lstm_cell_kernel(%arg0: i32, %arg1: memref<2x48xf32, #tpu.memory_space<vmem>>, %arg2: memref<2x32xf32, #tpu.memory_space<vmem>>, %arg3: memref<48x128xf32, #tpu.memory_space<vmem>>, %arg4: memref<2x32xf32, #tpu.memory_space<vmem>>, %arg5: memref<2x32xf32, #tpu.memory_space<vmem>>) attributes {dimension_semantics = [#tpu.dimension_semantics<parallel>], iteration_bounds = array<i64: 1>, scalar_prefetch = 0 : i64, scratch_operands = 0 : i64, tpu.core_type = #tpu.core_type<tc>, window_params = [{pipeline_mode = #tpu.pipeline_mode<synchronous>, transform_indices = @transform_0, window_bounds = array<i64: 2, 48>}, {transform_indices = @transform_1, window_bounds = array<i64: 2, 32>}, {transform_indices = @transform_2, window_bounds = array<i64: 48, 128>}, {transform_indices = @transform_3, window_bounds = array<i64: 2, 32>}, {transform_indices = @transform_4, window_bounds = array<i64: 2, 32>}]} {
    %c0 = arith.constant 0 : index
    %c0_0 = arith.constant 0 : index
    %0 = vector.load %arg1[%c0, %c0_0] : memref<2x48xf32, #tpu.memory_space<vmem>>, vector<2x48xf32>
    %c0_1 = arith.constant 0 : index
    %c0_2 = arith.constant 0 : index
    %1 = vector.load %arg2[%c0_1, %c0_2] : memref<2x32xf32, #tpu.memory_space<vmem>>, vector<2x32xf32>
    %c0_3 = arith.constant 0 : index
    %c0_4 = arith.constant 0 : index
    %2 = vector.load %arg3[%c0_3, %c0_4] : memref<48x128xf32, #tpu.memory_space<vmem>>, vector<48x128xf32>
    %cst = arith.constant dense<0.000000e+00> : vector<2x128xf32>
    %3 = tpu.matmul %0, %2, %cst {dimension_numbers = #tpu.dot_dimension_numbers<[1], [0], [0], [1], [0, 0, 1, 1], [], []>} : vector<2x48xf32>, vector<48x128xf32>, vector<2x128xf32> -> vector<2x128xf32>
    %4 = vector.extract_strided_slice %3 {offsets = [0, 0], sizes = [2, 32], strides = [1, 1]} : vector<2x128xf32> to vector<2x32xf32>
    %5 = arith.negf %4 : vector<2x32xf32>
    %6 = math.exp %5 : vector<2x32xf32>
    %cst_5 = arith.constant 1.000000e+00 : f32
    %7 = vector.broadcast %cst_5 : f32 to vector<2x32xf32>
    %8 = arith.addf %7, %6 : vector<2x32xf32>
    %9 = arith.divf %7, %8 : vector<2x32xf32>
    %10 = vector.extract_strided_slice %3 {offsets = [0, 32], sizes = [2, 32], strides = [1, 1]} : vector<2x128xf32> to vector<2x32xf32>
    %11 = arith.negf %10 : vector<2x32xf32>
    %12 = math.exp %11 : vector<2x32xf32>
    %cst_6 = arith.constant 1.000000e+00 : f32
    %13 = vector.broadcast %cst_6 : f32 to vector<2x32xf32>
    %14 = arith.addf %13, %12 : vector<2x32xf32>
    %15 = arith.divf %13, %14 : vector<2x32xf32>
    %16 = vector.extract_strided_slice %3 {offsets = [0, 64], sizes = [2, 32], strides = [1, 1]} : vector<2x128xf32> to vector<2x32xf32>
    %17 = math.tanh %16 : vector<2x32xf32>
    %18 = vector.extract_strided_slice %3 {offsets = [0, 96], sizes = [2, 32], strides = [1, 1]} : vector<2x128xf32> to vector<2x32xf32>
    %19 = arith.negf %18 : vector<2x32xf32>
    %20 = math.exp %19 : vector<2x32xf32>
    %cst_7 = arith.constant 1.000000e+00 : f32
    %21 = vector.broadcast %cst_7 : f32 to vector<2x32xf32>
    %22 = arith.addf %21, %20 : vector<2x32xf32>
    %23 = arith.divf %21, %22 : vector<2x32xf32>
    %24 = arith.mulf %15, %1 : vector<2x32xf32>
    %25 = arith.mulf %9, %17 : vector<2x32xf32>
    %26 = arith.addf %24, %25 : vector<2x32xf32>
    %27 = math.tanh %1 : vector<2x32xf32>
    %28 = arith.mulf %23, %27 : vector<2x32xf32>
    %c0_8 = arith.constant 0 : index
    %c0_9 = arith.constant 0 : index
    %29 = vector.load %arg4[%c0_8, %c0_9] : memref<2x32xf32, #tpu.memory_space<vmem>>, vector<2x32xf32>
    tpu.vector_store %arg4[%c0_8, %c0_9], %28 {strides = array<i32>} : memref<2x32xf32, #tpu.memory_space<vmem>>, vector<2x32xf32>,
    %c0_10 = arith.constant 0 : index
    %c0_11 = arith.constant 0 : index
    %30 = vector.load %arg5[%c0_10, %c0_11] : memref<2x32xf32, #tpu.memory_space<vmem>>, vector<2x32xf32>
    tpu.vector_store %arg5[%c0_10, %c0_11], %26 {strides = array<i32>} : memref<2x32xf32, #tpu.memory_space<vmem>>, vector<2x32xf32>,
    return
  }
  func.func @transform_0(%arg0: i32) -> (i32, i32) {
    %c0_i32 = arith.constant 0 : i32
    %c0_i32_0 = arith.constant 0 : i32
    %c0_i32_1 = arith.constant 0 : i32
    return %c0_i32, %c0_i32_0 : i32, i32
  }
  func.func @transform_1(%arg0: i32) -> (i32, i32) {
    %c0_i32 = arith.constant 0 : i32
    %c0_i32_0 = arith.constant 0 : i32
    return %c0_i32, %arg0 : i32, i32
  }
  func.func @transform_2(%arg0: i32) -> (i32, i32) {
    %c0_i32 = arith.constant 0 : i32
    %c0_i32_0 = arith.constant 0 : i32
    return %c0_i32, %arg0 : i32, i32
  }
  func.func @transform_3(%arg0: i32) -> (i32, i32) {
    %c0_i32 = arith.constant 0 : i32
    %c0_i32_0 = arith.constant 0 : i32
    return %c0_i32, %arg0 : i32, i32
  }
  func.func @transform_4(%arg0: i32) -> (i32, i32) {
    %c0_i32 = arith.constant 0 : i32
    %c0_i32_0 = arith.constant 0 : i32
    return %c0_i32, %arg0 : i32, i32
  }
}

</mosaic_0001>

<llo_original>
// kernel: tpu_custom_call.1
$region0: #{tpu_custom_call.1}
  #allocation0 [shape = 'u32[]', space=smem, size = 0x4, offset = 0x4, fixed_abs, tag = 'smem constant byte address 0x4 - core index']
  #allocation1 [shape = 'u32[144,128]{1,0:T(1,128)}', space=vmem, size = 0x12000, scoped, tag = 'internal scratch']
  %s0 = inlined_call_operand.hbm [shape: f32[2,48], index: 0, kind: input, shape index: {}]
  %s1 = inlined_call_operand.vmem [shape: f32[2,32], index: 1, kind: input, shape index: {}]
  %s2 = inlined_call_operand.hbm [shape: f32[48,128], index: 2, kind: input, shape index: {}]
  %s3 = inlined_call_operand.hbm [shape: f32[2,32], index: 3, kind: output, shape index: {0}]
  %s4 = inlined_call_operand.hbm [shape: f32[2,32], index: 4, kind: output, shape index: {1}]
  %5 = xla_tuple %s3, %s4
  %s6 = sld [smem:[#allocation0]]
  $region38: #{tpu_custom_call.1} parent=0
    _
  %s8 = ssub.s32 1, %s6
  %s9 = scalar_select 0, %s8, %s6
  $region1: #{tpu_custom_call.1} parent=0
    #allocation2 [shape = 'u8[1024]{0}', space=vmem, size = 0x400, scoped, tag = 'input window, operand 0, single buffered']
    #allocation3 [shape = 's32[1]{0}', space=sflag, size = 0x4, scoped, tag = 'scoped memory for tpu_custom_call.1']
    #allocation4 [shape = 's32[1]{0}', space=sflag, size = 0x4, scoped, tag = 'scoped memory for tpu_custom_call.1']
    #allocation5 [shape = 'u8[24576]{0}', space=vmem, size = 0x6000, scoped, tag = 'input window, operand 2, single buffered']
    #allocation6 [shape = 's32[1]{0}', space=sflag, size = 0x4, scoped, tag = 'scoped memory for tpu_custom_call.1']
    #allocation7 [shape = 'u8[1024]{0}', space=vmem, size = 0x400, scoped, tag = 'output window, operand 0, single buffered']
    #allocation8 [shape = 'u8[1024]{0}', space=vmem, size = 0x400, scoped, tag = 'output window, operand 1, single buffered']
    #allocation9 [shape = 's32[1]{0}', space=sflag, size = 0x4, scoped, tag = 'scoped memory for tpu_custom_call.1']
    %10 = vsyncpa [#allocation3], 0
    %11 = vsyncpa [#allocation6], 0
    %12 = vsyncpa [#allocation4], 0
    %13 = vsyncpa [#allocation9], 0
    // Predicated region
    $region2: #{tpu_custom_call.1} parent=1 // pred_check
      _
    $region3: #{tpu_custom_call.1} parent=1 // pred_check_branch
      %15 = sbr.rel (0) target = $region5
    $region4: #{tpu_custom_call.1} parent=1 // pred_region
      %s17 = ssub.s32 32, 32
      %18 = vsyncadd [#allocation3], %s17
      %s20 = sshll.u32 [#allocation2], 4
      %s21 = int_to_ptr.vmem [resolvable:$true] %s20
      %23 = dma.hbm_to_vmem [thread:$0]  %s0, 32, %s21, [#allocation3]
    $region5: #{tpu_custom_call.1} parent=1 // pred_fallthru
      _
    // Predicated region
    $region6: #{tpu_custom_call.1} parent=1 // pred_check
      _
    $region7: #{tpu_custom_call.1} parent=1 // pred_check_branch
      %25 = sbr.rel (0) target = $region9
    $region8: #{tpu_custom_call.1} parent=1 // pred_region
      _
    $region9: #{tpu_custom_call.1} parent=1 // pred_fallthru
      _
    // Predicated region
    $region10: #{tpu_custom_call.1} parent=1 // pred_check
      _
    $region11: #{tpu_custom_call.1} parent=1 // pred_check_branch
      %27 = sbr.rel (0) target = $region13
    $region12: #{tpu_custom_call.1} parent=1 // pred_region
      %s29 = ssub.s32 768, 768
      %30 = vsyncadd [#allocation6], %s29
      %s31 = sshll.u32 [#allocation5], 4
      %s32 = int_to_ptr.vmem [resolvable:$true] %s31
      %37 = dma.hbm_to_vmem [thread:$0]  %s2, 768, %s32, [#allocation6], 128, 128, 8
    $region13: #{tpu_custom_call.1} parent=1 // pred_fallthru
      _
    // Predicated region
    $region14: #{tpu_custom_call.1} parent=1 // pred_check
      _
    $region15: #{tpu_custom_call.1} parent=1 // pred_check_branch
      %39 = sbr.rel (0) target = $region17
    $region16: #{tpu_custom_call.1} parent=1 // pred_region
      %40 = dma.done [#allocation3], 32
    $region17: #{tpu_custom_call.1} parent=1 // pred_fallthru
      _
    // Predicated region
    $region18: #{tpu_custom_call.1} parent=1 // pred_check
      _
    $region19: #{tpu_custom_call.1} parent=1 // pred_check_branch
      %42 = sbr.rel (0) target = $region21
    $region20: #{tpu_custom_call.1} parent=1 // pred_region
      %43 = dma.done [#allocation6], 768
    $region21: #{tpu_custom_call.1} parent=1 // pred_fallthru
      _
    %v44 = vld [vmem:[#allocation2] sm:$0x3]
    %v45 = vld [vmem:[%s1] sm:$0x3]
    %v46 = vld [vmem:[#allocation5] sm:$0xff]
    %v47 = vld [vmem:[#allocation5 + $0x8] sm:$0xff]
    %v48 = vld [vmem:[#allocation5 + $0x10] sm:$0xff]
    %v49 = vld [vmem:[#allocation5 + $0x18] sm:$0xff]
    %v50 = vld [vmem:[#allocation5 + $0x20] sm:$0xff]
    %v51 = vld [vmem:[#allocation5 + $0x28] sm:$0xff]
    %vm52 = vcmask 392192
    %v54 = vsel %vm52, %v44, 0
    %56 = vmatprep.subr.mxu0 0.0
    %57 = vmatpush1.msra.mxu0 %v46
    %58 = vmatprep.subr.mxu0 0.0
    %59 = vmatpush1.msra.mxu0 %v47
    %60 = vmatprep.subr.mxu0 0.0
    %61 = vmatpush1.msra.mxu0 %v48
    %62 = vmatprep.subr.mxu0 0.0
    %63 = vmatpush1.msra.mxu0 %v49
    %64 = vmatprep.subr.mxu0 0.0
    %65 = vmatpush1.msra.mxu0 %v50
    %66 = vmatprep.subr.mxu0 0.0
    %67 = vmatpush1.msra.mxu0 %v51
    %68 = vmatprep.subr.mxu0 0.0
    %69 = vmatpush1.msra.mxu0 0.0
    %70 = vmatprep.subr.mxu0 0.0
    %71 = vmatpush1.msra.mxu0 0.0
    %72 = vmatprep.subr.mxu0 0.0
    %73 = vmatpush1.msra.mxu0 0.0
    %74 = vmatprep.subr.mxu0 0.0
    %75 = vmatpush1.msra.mxu0 0.0
    %76 = vmatprep.subr.mxu0 0.0
    %77 = vmatpush1.msra.mxu0 0.0
    %78 = vmatprep.subr.mxu0 0.0
    %79 = vmatpush1.msra.mxu0 0.0
    %80 = vmatprep.subr.mxu0 0.0
    %81 = vmatpush1.msra.mxu0 0.0
    %82 = vmatprep.subr.mxu0 0.0
    %83 = vmatpush1.msra.mxu0 0.0
    %84 = vmatprep.subr.mxu0 0.0
    %85 = vmatpush1.msra.mxu0 0.0
    %86 = vmatprep.subr.mxu0 0.0
    %87 = vmatpush1.msra.mxu0 0.0
    %88 = vmatprep.subr.mxu0 0.0
    %89 = vmatpush1.msra.mxu0 0.0
    %90 = vmatprep.subr.mxu0 0.0
    %91 = vmatpush1.msra.mxu0 0.0
    %92 = vmatprep.subr.mxu0 0.0
    %93 = vmatpush1.msra.mxu0 0.0
    %94 = vmatprep.subr.mxu0 0.0
    %95 = vmatpush1.msra.mxu0 0.0
    %96 = vmatprep.subr.mxu0 0.0
    %97 = vmatpush1.msra.mxu0 0.0
    %98 = vmatprep.subr.mxu0 0.0
    %99 = vmatpush1.msra.mxu0 0.0
    %100 = vmatprep.subr.mxu0 0.0
    %101 = vmatpush1.msra.mxu0 0.0
    %102 = vmatprep.subr.mxu0 0.0
    %103 = vmatpush1.msra.mxu0 0.0
    %104 = vmatprep.subr.mxu0 0.0
    %105 = vmatpush1.msra.mxu0 0.0
    %106 = vmatprep.subr.mxu0 0.0
    %107 = vmatpush1.msra.mxu0 0.0
    %108 = vmatprep.subr.mxu0 0.0
    %109 = vmatpush1.msra.mxu0 0.0
    %110 = vmatprep.subr.mxu0 0.0
    %111 = vmatpush1.msra.mxu0 0.0
    %112 = vmatprep.subr.mxu0 0.0
    %113 = vmatpush1.msra.mxu0 0.0
    %114 = vmatprep.subr.mxu0 0.0
    %115 = vmatpush1.msra.mxu0 0.0
    %116 = vmatprep.subr.mxu0 0.0
    %117 = vmatpush1.msra.mxu0 0.0
    %118 = vmatprep.subr.mxu0 0.0
    %119 = vmatpush1.msra.mxu0 0.0
    %120 = vmatprep.mubr.f32.mxu0 0.0
    %121 = vmatmul.mubr.f32.gmra.mrb[0].mxu0 %v54
    %v122 = vpop.f32.mrb[0].mxu0
    %v123 = vadd.f32 0.0, %v122
    %v124 = vpop.f32.mrb[0].mxu0
    %125 = vdwg.mxu0
    %v126 = vxor.u32 %v123, 2147483648
    %v127 = vmul.f32 %v126, 1.442695
    %v128 = vpow.pop %v127
    %v129 = vadd.f32 %v128, 1.0
    %v130 = vrcp.pop %v129
    %v131 = vmul.f32 1.0, %v130
    %v132 = vtanh.pop %v123
    %134 = vrot.lane.b32.xlu0 %v45, 32
    %v135 = vpop.permute.xlu0 %134
    %v137 = vmul.f32 %v131, %v135
    %139 = vrot.lane.b32.xlu0 %v132, 64
    %v140 = vpop.permute.xlu0 %139
    %v142 = vmul.f32 %v131, %v140
    %144 = vrot.lane.b32.xlu0 %v142, 32
    %v145 = vpop.permute.xlu0 %144
    %v147 = vadd.f32 %v137, %v145
    %v148 = vtanh.pop %v45
    %150 = vrot.lane.b32.xlu0 %v148, 96
    %v151 = vpop.permute.xlu0 %150
    %v153 = vmul.f32 %v131, %v151
    %155 = vrot.lane.b32.xlu0 %v153, 32
    %v156 = vpop.permute.xlu0 %155
    %vm158 = vcmask 254976
    %159 = vst.msk [vmem:[#allocation7] sm:$0x3] %vm158, %v156
    %161 = vrot.lane.b32.xlu0 %v147, 96
    %v162 = vpop.permute.xlu0 %161
    %164 = vst.msk [vmem:[#allocation8] sm:$0x3] %vm158, %v162
    // Predicated region
    $region22: #{tpu_custom_call.1} parent=1 // pred_check
      _
    $region23: #{tpu_custom_call.1} parent=1 // pred_check_branch
      %166 = sbr.rel (0) target = $region25
    $region24: #{tpu_custom_call.1} parent=1 // pred_region
      %s168 = ssub.s32 32, 32
      %169 = vsyncadd [#allocation4], %s168
      %s171 = sshll.u32 [#allocation7], 4
      %s172 = int_to_ptr.vmem [resolvable:$true] %s171
      %174 = dma.vmem_to_hbm [thread:$0]  %s172, 32, %s3, [#allocation4]
    $region25: #{tpu_custom_call.1} parent=1 // pred_fallthru
      _
    // Predicated region
    $region26: #{tpu_custom_call.1} parent=1 // pred_check
      _
    $region27: #{tpu_custom_call.1} parent=1 // pred_check_branch
      %176 = sbr.rel (0) target = $region29
    $region28: #{tpu_custom_call.1} parent=1 // pred_region
      %s178 = ssub.s32 32, 32
      %179 = vsyncadd [#allocation9], %s178
      %s181 = sshll.u32 [#allocation8], 4
      %s182 = int_to_ptr.vmem [resolvable:$true] %s181
      %184 = dma.vmem_to_hbm [thread:$0]  %s182, 32, %s4, [#allocation9]
    $region29: #{tpu_custom_call.1} parent=1 // pred_fallthru
      _
    // Predicated region
    $region30: #{tpu_custom_call.1} parent=1 // pred_check
      _
    $region31: #{tpu_custom_call.1} parent=1 // pred_check_branch
      %186 = sbr.rel (0) target = $region33
    $region32: #{tpu_custom_call.1} parent=1 // pred_region
      %187 = dma.done [#allocation4], 32
    $region33: #{tpu_custom_call.1} parent=1 // pred_fallthru
      _
    // Predicated region
    $region34: #{tpu_custom_call.1} parent=1 // pred_check
      _
    $region35: #{tpu_custom_call.1} parent=1 // pred_check_branch
      %189 = sbr.rel (0) target = $region37
    $region36: #{tpu_custom_call.1} parent=1 // pred_region
      %190 = dma.done [#allocation9], 32
    $region37: #{tpu_custom_call.1} parent=1 // pred_fallthru
      _
    %191 = vsyncpa [#allocation3], 1
    %192 = vsyncpa [#allocation6], 1
    %193 = vsyncpa [#allocation4], 1
    %194 = vsyncpa [#allocation9], 1

</llo_original>
